<compile_context>
chip_gen: v6e
topology: v6e:2x2x1
jax: 0.10.0
libtpu: 0.0.40
codegen_flags: <defaults>
</compile_context>

<pallas_src>
import jax
import jax.numpy as jnp
from jax import lax
from jax.experimental import pallas as pl
from jax.experimental.pallas import tpu as pltpu


B_TILE_MAX = 2048  # max batch lanes per grid step; sweep 1024/2048/4096/8192


def _choose_tiling(batch, b_tile_max):
    """Pick (b_tile, b_pad): lane-dense tiles as large as possible up to
    b_tile_max while keeping the grid >= 2 steps and even, so the "parallel"
    batch axis can shard across v7x's two TensorCores."""
    half = pl.cdiv(batch, 2 * 128) * 128          # tile size that gives ~2 steps
    b_tile = max(128, min(b_tile_max, half))
    n_steps = pl.cdiv(batch, b_tile)
    if n_steps > 1 and n_steps % 2 == 1:
        n_steps += 1                               # even grid for megacore
    return b_tile, n_steps * b_tile


def _strokenet_kernel(x_dense_ref, x_cat_ref, w1d_ref, w1e_ref,
                      w2_ref, w3_ref, misc_ref, o_ref):
    """MLP in transposed (features, batch) layout:
       Linear(in,64)->ReLU -> Linear(64,40)->ReLU -> Linear(40,14)->ReLU
       -> Linear(14,1) -> Sigmoid.
       x_dense = [x_num | x_bin | 1] (b1 folded into the weight); embedding
       tables are folded into W1 and applied via one multi-hot matmul."""
    f32, bf16 = jnp.float32, jnp.bfloat16
    n_cat, bt = x_cat_ref.shape
    total_card = w1e_ref.shape[1]

    # ---- Layer 1: one dense dot + one fused-embedding (multi-hot) dot ------
    h1 = jnp.dot(w1d_ref[...], x_dense_ref[...], preferred_element_type=f32)

    cat = x_cat_ref[...]                               # (n_cat, bt) global ids
    iota = lax.broadcasted_iota(jnp.int32, (total_card, bt), 0)
    hot = iota == cat[0:1, :]
    for i in range(1, n_cat):
        hot = jnp.logical_or(hot, iota == cat[i:i + 1, :])
    h1 = h1 + jnp.dot(w1e_ref[...], hot.astype(bf16),
                      preferred_element_type=f32)
    h1 = jnp.maximum(h1, 0.0).astype(bf16)             # (64, bt)

    # ---- Packed small f32 params: columns = [b2 | b3 | w4 | b4] ------------
    misc = misc_ref[...]                                # (64, 4) f32
    b2 = misc[:40, 0:1]
    b3 = misc[:14, 1:2]
    w4 = misc[:14, 2:3]
    b4 = misc[0:1, 3:4]

    # ---- Layer 2 ------------------------------------------------------------
    h2 = jnp.dot(w2_ref[...], h1, preferred_element_type=f32) + b2
    h2 = jnp.maximum(h2, 0.0).astype(bf16)              # (40, bt)

    # ---- Layer 3 ------------------------------------------------------------
    h3 = jnp.dot(w3_ref[...], h2, preferred_element_type=f32) + b3
    h3 = jnp.maximum(h3, 0.0)                           # (14, bt) f32

    # ---- Layer 4 (14 -> 1): VPU mul + sublane reduce, then stable sigmoid ---
    logits = jnp.sum(h3 * w4, axis=0, keepdims=True) + b4
    logits = jnp.clip(logits, -30.0, 30.0)              # keep exp() finite
    o_ref[...] = pl.reciprocal(1.0 + jnp.exp(-logits), approx=True)


def strokenet_forward(x_num, x_bin, x_cat, params, *, b_tile_max=B_TILE_MAX):
    """Full StrokeNet forward. Layout plumbing (fused concat/pad/transpose and
    weight folding) lives in the jit-fusable wrapper; all per-sample compute
    runs inside one batch-tiled Pallas kernel with resident weights."""
    n_cat = len(params["embeddings"])
    num_numeric = x_num.shape[1]
    num_binary = x_bin.shape[1]
    num_dense = num_numeric + num_binary + 1            # +1 = ones row (bias)
    b = x_num.shape[0]

    b_tile, b_pad = _choose_tiling(b, b_tile_max)
    grid = (b_pad // b_tile,)

    # ---- Activations: one fused concat+cast+pad+transpose per stream -------
    ones = jnp.ones((b, 1), x_num.dtype)
    x_dense = jnp.concatenate([x_num, x_bin, ones], axis=1).astype(jnp.bfloat16)
    x_dense_t = jnp.pad(x_dense, ((0, b_pad - b), (0, 0))).T      # (num_dense, b_pad)

    cards = [int(t.shape[0]) for t in params["embeddings"]]
    offs, acc = [], 0
    for c in cards:
        offs.append(acc)
        acc += c
    total_card = acc
    offsets = jnp.asarray(offs, dtype=jnp.int32)
    x_cat_g = x_cat.astype(jnp.int32) + offsets[None, :]          # global ids
    x_cat_t = jnp.pad(x_cat_g, ((0, b_pad - b), (0, 0))).T        # (n_cat, b_pad)

    # ---- Weights: layer 1 folded into two resident bf16 operands -----------
    w1 = params["w1"].astype(jnp.float32)                          # (64, D_in)
    b1_col = params["b1"].reshape(-1, 1).astype(jnp.float32)
    w1_dense = jnp.concatenate(
        [w1[:, :num_numeric + num_binary], b1_col], axis=1).astype(jnp.bfloat16)

    merged, off = [], num_numeric + num_binary
    for tbl in params["embeddings"]:
        card, edim = tbl.shape
        merged.append(w1[:, off:off + edim] @ tbl.T)               # (64, card)
        off += edim
    w1_emb = jnp.concatenate(merged, axis=1).astype(jnp.bfloat16)  # (64, total_card)

    w2 = params["w2"].astype(jnp.bfloat16)                         # (40, 64)
    w3 = params["w3"].astype(jnp.bfloat16)                         # (14, 40)

    # Pack the remaining tiny f32 params into a single operand.
    misc = jnp.zeros((64, 4), jnp.float32)
    misc = misc.at[:40, 0].set(params["b2"])
    misc = misc.at[:14, 1].set(params["b3"])
    misc = misc.at[:14, 2].set(params["w4"].reshape(-1))
    misc = misc.at[0, 3].set(params["b4"].reshape(()))

    def batch_spec(rows):                                # streamed over lanes
        return pl.BlockSpec((rows, b_tile), lambda i: (0, i))

    def resident_spec(a):                                # DMA'd once, stays put
        return pl.BlockSpec(a.shape, lambda i: (0, 0))

    weights = [w1_dense, w1_emb, w2, w3, misc]
    in_specs = ([batch_spec(num_dense), batch_spec(n_cat)]
                + [resident_spec(a) for a in weights])

    flops = int(2 * b_pad * (num_dense * 64 + total_card * 64
                             + 64 * 40 + 40 * 14 + 14))
    bytes_accessed = int(x_dense_t.size * 2 + x_cat_t.size * 4
                         + sum(int(a.size) * a.dtype.itemsize for a in weights)
                         + b_pad * 4)

    out = pl.pallas_call(
        _strokenet_kernel,
        grid=grid,
        in_specs=in_specs,
        out_specs=pl.BlockSpec((1, b_tile), lambda i: (0, i)),
        out_shape=jax.ShapeDtypeStruct((1, b_pad), jnp.float32),
        compiler_params=pltpu.CompilerParams(
            dimension_semantics=("parallel",),
            vmem_limit_bytes=32 * 1024 * 1024),
        cost_estimate=pl.CostEstimate(
            flops=flops, transcendentals=2 * b_pad,
            bytes_accessed=bytes_accessed),
    )(x_dense_t, x_cat_t, *weights)

    return out[:, :b].T                                  # (B, 1)


def init_params(key, num_numeric, num_binary, cat_cardinalities, embed_dim):
    """Deterministic synthetic params; shapes match the nn.Module (torch out,in)."""
    n_cat = len(cat_cardinalities)
    input_dim = num_numeric + num_binary + embed_dim * n_cat
    keys = jax.random.split(key, n_cat + 8)

    params = {"embeddings": [
        0.1 * jax.random.normal(keys[i], (card, embed_dim), dtype=jnp.float32)
        for i, card in enumerate(cat_cardinalities.values())]}

    def linear(kw, kb, fan_out, fan_in):
        w = 0.1 * jax.random.normal(kw, (fan_out, fan_in), dtype=jnp.float32)
        b = 0.1 * jax.random.normal(kb, (fan_out,), dtype=jnp.float32)
        return w, b

    params["w1"], params["b1"] = linear(keys[n_cat + 0], keys[n_cat + 1], 64, input_dim)
    params["w2"], params["b2"] = linear(keys[n_cat + 2], keys[n_cat + 3], 40, 64)
    params["w3"], params["b3"] = linear(keys[n_cat + 4], keys[n_cat + 5], 14, 40)
    params["w4"], params["b4"] = linear(keys[n_cat + 6], keys[n_cat + 7], 1, 14)
    return params


def _reference_forward(x_num, x_bin, x_cat, params):
    """Pure-JAX f32 reference mirroring the PyTorch module."""
    embs = [jnp.take(t, x_cat[:, i], axis=0)
            for i, t in enumerate(params["embeddings"])]
    x = jnp.concatenate([x_num, x_bin] + embs, axis=1)
    h = jnp.maximum(x @ params["w1"].T + params["b1"], 0.0)
    h = jnp.maximum(h @ params["w2"].T + params["b2"], 0.0)
    h = jnp.maximum(h @ params["w3"].T + params["b3"], 0.0)
    return jax.nn.sigmoid(h @ params["w4"].T + params["b4"])


if __name__ == "__main__":
    num_numeric = 4
    num_binary = 3
    cat_cardinalities = {"work_type": 5, "smoking_status": 4}
    embed_dim = 8

    key = jax.random.PRNGKey(0)
    k_params, k_data = jax.random.split(key)
    params = init_params(k_params, num_numeric, num_binary,
                         cat_cardinalities, embed_dim)

    fwd = jax.jit(strokenet_forward)

    # batch=384 exercises the small-batch path (2 x 256-lane grid steps);
    # batch=4096 exercises the full-size tile path (2 x 2048-lane grid steps).
    for batch in (384, 4096):
        k_num, k_bin, k_cat = jax.random.split(jax.random.fold_in(k_data, batch), 3)
        x_num = jax.random.normal(k_num, (batch, num_numeric), dtype=jnp.float32)
        x_bin = jax.random.bernoulli(
            k_bin, 0.5, (batch, num_binary)).astype(jnp.float32)
        cat_keys = jax.random.split(k_cat, len(cat_cardinalities))
        x_cat = jnp.stack(
            [jax.random.randint(ck, (batch,), 0, card)
             for ck, card in zip(cat_keys, cat_cardinalities.values())],
            axis=1).astype(jnp.int32)

        out = jax.block_until_ready(fwd(x_num, x_bin, x_cat, params))
        ref = _reference_forward(x_num, x_bin, x_cat, params)

        assert out.shape == (batch, 1), out.shape
        max_err = float(jnp.max(jnp.abs(out - ref)))
        assert max_err < 2e-2, f"batch={batch}: max abs err {max_err}"

    print("KERNEL_OK")
</pallas_src>

<mosaic_0001>
module attributes {stable_mosaic.version = 11 : i64} {
  func.func @_strokenet_kernel(%arg0: i32, %arg1: memref<8x256xbf16, #tpu.memory_space<vmem>>, %arg2: memref<2x256xi32, #tpu.memory_space<vmem>>, %arg3: memref<64x8xbf16, #tpu.memory_space<vmem>>, %arg4: memref<64x9xbf16, #tpu.memory_space<vmem>>, %arg5: memref<40x64xbf16, #tpu.memory_space<vmem>>, %arg6: memref<14x40xbf16, #tpu.memory_space<vmem>>, %arg7: memref<64x4xf32, #tpu.memory_space<vmem>>, %arg8: memref<1x256xf32, #tpu.memory_space<vmem>>) attributes {dimension_semantics = [#tpu.dimension_semantics<parallel>], iteration_bounds = array<i64: 2>, scalar_prefetch = 0 : i64, scratch_operands = 0 : i64, tpu.core_type = #tpu.core_type<tc>, window_params = [{transform_indices = @transform_0, window_bounds = array<i64: 8, 256>}, {transform_indices = @transform_1, window_bounds = array<i64: 2, 256>}, {pipeline_mode = #tpu.pipeline_mode<synchronous>, transform_indices = @transform_2, window_bounds = array<i64: 64, 8>}, {pipeline_mode = #tpu.pipeline_mode<synchronous>, transform_indices = @transform_3, window_bounds = array<i64: 64, 9>}, {pipeline_mode = #tpu.pipeline_mode<synchronous>, transform_indices = @transform_4, window_bounds = array<i64: 40, 64>}, {pipeline_mode = #tpu.pipeline_mode<synchronous>, transform_indices = @transform_5, window_bounds = array<i64: 14, 40>}, {pipeline_mode = #tpu.pipeline_mode<synchronous>, transform_indices = @transform_6, window_bounds = array<i64: 64, 4>}, {transform_indices = @transform_7, window_bounds = array<i64: 1, 256>}]} {
    %c0 = arith.constant 0 : index
    %c0_0 = arith.constant 0 : index
    %0 = vector.load %arg3[%c0, %c0_0] : memref<64x8xbf16, #tpu.memory_space<vmem>>, vector<64x8xbf16>
    %c0_1 = arith.constant 0 : index
    %c0_2 = arith.constant 0 : index
    %1 = vector.load %arg1[%c0_1, %c0_2] : memref<8x256xbf16, #tpu.memory_space<vmem>>, vector<8x256xbf16>
    %cst = arith.constant dense<0.000000e+00> : vector<64x256xf32>
    %2 = tpu.matmul %0, %1, %cst {dimension_numbers = #tpu.dot_dimension_numbers<[1], [0], [0], [1], [0, 0, 1, 1], [], []>} : vector<64x8xbf16>, vector<8x256xbf16>, vector<64x256xf32> -> vector<64x256xf32>
    %c0_3 = arith.constant 0 : index
    %c0_4 = arith.constant 0 : index
    %3 = vector.load %arg2[%c0_3, %c0_4] : memref<2x256xi32, #tpu.memory_space<vmem>>, vector<2x256xi32>
    %4 = tpu.iota {dimensions = array<i32: 0>} : vector<9x256xi32>
    %5 = vector.extract_strided_slice %3 {offsets = [0, 0], sizes = [1, 256], strides = [1, 1]} : vector<2x256xi32> to vector<1x256xi32>
    %6 = vector.broadcast %5 : vector<1x256xi32> to vector<9x256xi32>
    %7 = arith.cmpi eq, %4, %6 : vector<9x256xi32>
    %8 = vector.extract_strided_slice %3 {offsets = [1, 0], sizes = [1, 256], strides = [1, 1]} : vector<2x256xi32> to vector<1x256xi32>
    %9 = vector.broadcast %8 : vector<1x256xi32> to vector<9x256xi32>
    %10 = arith.cmpi eq, %4, %9 : vector<9x256xi32>
    %11 = arith.ori %7, %10 : vector<9x256xi1>
    %c0_5 = arith.constant 0 : index
    %c0_6 = arith.constant 0 : index
    %12 = vector.load %arg4[%c0_5, %c0_6] : memref<64x9xbf16, #tpu.memory_space<vmem>>, vector<64x9xbf16>
    %13 = arith.extui %11 : vector<9x256xi1> to vector<9x256xi32>
    %14 = arith.sitofp %13 : vector<9x256xi32> to vector<9x256xf32>
    %15 = arith.truncf %14 : vector<9x256xf32> to vector<9x256xbf16>
    %cst_7 = arith.constant dense<0.000000e+00> : vector<64x256xf32>
    %16 = tpu.matmul %12, %15, %cst_7 {dimension_numbers = #tpu.dot_dimension_numbers<[1], [0], [0], [1], [0, 0, 1, 1], [], []>} : vector<64x9xbf16>, vector<9x256xbf16>, vector<64x256xf32> -> vector<64x256xf32>
    %17 = arith.addf %2, %16 : vector<64x256xf32>
    %cst_8 = arith.constant 0.000000e+00 : f32
    %18 = vector.broadcast %cst_8 : f32 to vector<64x256xf32>
    %19 = arith.maximumf %17, %18 : vector<64x256xf32>
    %20 = arith.truncf %19 : vector<64x256xf32> to vector<64x256xbf16>
    %c0_9 = arith.constant 0 : index
    %c0_10 = arith.constant 0 : index
    %21 = vector.load %arg7[%c0_9, %c0_10] : memref<64x4xf32, #tpu.memory_space<vmem>>, vector<64x4xf32>
    %22 = vector.extract_strided_slice %21 {offsets = [0, 0], sizes = [40, 1], strides = [1, 1]} : vector<64x4xf32> to vector<40x1xf32>
    %23 = vector.extract_strided_slice %21 {offsets = [0, 1], sizes = [14, 1], strides = [1, 1]} : vector<64x4xf32> to vector<14x1xf32>
    %24 = vector.extract_strided_slice %21 {offsets = [0, 2], sizes = [14, 1], strides = [1, 1]} : vector<64x4xf32> to vector<14x1xf32>
    %25 = vector.extract_strided_slice %21 {offsets = [0, 3], sizes = [1, 1], strides = [1, 1]} : vector<64x4xf32> to vector<1x1xf32>
    %c0_11 = arith.constant 0 : index
    %c0_12 = arith.constant 0 : index
    %26 = vector.load %arg5[%c0_11, %c0_12] : memref<40x64xbf16, #tpu.memory_space<vmem>>, vector<40x64xbf16>
    %cst_13 = arith.constant dense<0.000000e+00> : vector<40x256xf32>
    %27 = tpu.matmul %26, %20, %cst_13 {dimension_numbers = #tpu.dot_dimension_numbers<[1], [0], [0], [1], [0, 0, 1, 1], [], []>} : vector<40x64xbf16>, vector<64x256xbf16>, vector<40x256xf32> -> vector<40x256xf32>
    %28 = vector.broadcast %22 : vector<40x1xf32> to vector<40x256xf32>
    %29 = arith.addf %27, %28 : vector<40x256xf32>
    %cst_14 = arith.constant 0.000000e+00 : f32
    %30 = vector.broadcast %cst_14 : f32 to vector<40x256xf32>
    %31 = arith.maximumf %29, %30 : vector<40x256xf32>
    %32 = arith.truncf %31 : vector<40x256xf32> to vector<40x256xbf16>
    %c0_15 = arith.constant 0 : index
    %c0_16 = arith.constant 0 : index
    %33 = vector.load %arg6[%c0_15, %c0_16] : memref<14x40xbf16, #tpu.memory_space<vmem>>, vector<14x40xbf16>
    %cst_17 = arith.constant dense<0.000000e+00> : vector<14x256xf32>
    %34 = tpu.matmul %33, %32, %cst_17 {dimension_numbers = #tpu.dot_dimension_numbers<[1], [0], [0], [1], [0, 0, 1, 1], [], []>} : vector<14x40xbf16>, vector<40x256xbf16>, vector<14x256xf32> -> vector<14x256xf32>
    %35 = vector.broadcast %23 : vector<14x1xf32> to vector<14x256xf32>
    %36 = arith.addf %34, %35 : vector<14x256xf32>
    %cst_18 = arith.constant 0.000000e+00 : f32
    %37 = vector.broadcast %cst_18 : f32 to vector<14x256xf32>
    %38 = arith.maximumf %36, %37 : vector<14x256xf32>
    %39 = vector.broadcast %24 : vector<14x1xf32> to vector<14x256xf32>
    %40 = arith.mulf %38, %39 : vector<14x256xf32>
    %cst_19 = arith.constant dense<0.000000e+00> : vector<256xf32>
    %41 = vector.multi_reduction <add>, %40, %cst_19 [0] : vector<14x256xf32> to vector<256xf32>
    %42 = vector.shape_cast %41 : vector<256xf32> to vector<1x256xf32>
    %43 = vector.broadcast %25 : vector<1x1xf32> to vector<1x256xf32>
    %44 = arith.addf %42, %43 : vector<1x256xf32>
    %cst_20 = arith.constant -3.000000e+01 : f32
    %cst_21 = arith.constant 3.000000e+01 : f32
    %45 = vector.broadcast %cst_20 : f32 to vector<1x256xf32>
    %46 = arith.maximumf %45, %44 : vector<1x256xf32>
    %47 = vector.broadcast %cst_21 : f32 to vector<1x256xf32>
    %48 = arith.minimumf %47, %46 : vector<1x256xf32>
    %cst_22 = arith.constant 0.000000e+00 : f32
    %49 = vector.broadcast %cst_22 : f32 to vector<1x256xf32>
    %50 = arith.subf %49, %48 : vector<1x256xf32>
    %51 = math.exp %50 : vector<1x256xf32>
    %cst_23 = arith.constant 1.000000e+00 : f32
    %52 = vector.broadcast %cst_23 : f32 to vector<1x256xf32>
    %53 = arith.addf %52, %51 : vector<1x256xf32>
    %54 = tpu.reciprocal %53 {approx = true} : vector<1x256xf32> -> vector<1x256xf32>
    %c0_24 = arith.constant 0 : index
    %c0_25 = arith.constant 0 : index
    %55 = vector.load %arg8[%c0_24, %c0_25] : memref<1x256xf32, #tpu.memory_space<vmem>>, vector<1x256xf32>
    tpu.vector_store %arg8[%c0_24, %c0_25], %54 {strides = array<i32>} : memref<1x256xf32, #tpu.memory_space<vmem>>, vector<1x256xf32>,
    return
  }
  func.func @transform_0(%arg0: i32) -> (i32, i32) {
    %c0_i32 = arith.constant 0 : i32
    %c0_i32_0 = arith.constant 0 : i32
    return %c0_i32, %arg0 : i32, i32
  }
  func.func @transform_1(%arg0: i32) -> (i32, i32) {
    %c0_i32 = arith.constant 0 : i32
    %c0_i32_0 = arith.constant 0 : i32
    return %c0_i32, %arg0 : i32, i32
  }
  func.func @transform_2(%arg0: i32) -> (i32, i32) {
    %c0_i32 = arith.constant 0 : i32
    %c0_i32_0 = arith.constant 0 : i32
    %c0_i32_1 = arith.constant 0 : i32
    return %c0_i32, %c0_i32_0 : i32, i32
  }
  func.func @transform_3(%arg0: i32) -> (i32, i32) {
    %c0_i32 = arith.constant 0 : i32
    %c0_i32_0 = arith.constant 0 : i32
    %c0_i32_1 = arith.constant 0 : i32
    return %c0_i32, %c0_i32_0 : i32, i32
  }
  func.func @transform_4(%arg0: i32) -> (i32, i32) {
    %c0_i32 = arith.constant 0 : i32
    %c0_i32_0 = arith.constant 0 : i32
    %c0_i32_1 = arith.constant 0 : i32
    return %c0_i32, %c0_i32_0 : i32, i32
  }
  func.func @transform_5(%arg0: i32) -> (i32, i32) {
    %c0_i32 = arith.constant 0 : i32
    %c0_i32_0 = arith.constant 0 : i32
    %c0_i32_1 = arith.constant 0 : i32
    return %c0_i32, %c0_i32_0 : i32, i32
  }
  func.func @transform_6(%arg0: i32) -> (i32, i32) {
    %c0_i32 = arith.constant 0 : i32
    %c0_i32_0 = arith.constant 0 : i32
    %c0_i32_1 = arith.constant 0 : i32
    return %c0_i32, %c0_i32_0 : i32, i32
  }
  func.func @transform_7(%arg0: i32) -> (i32, i32) {
    %c0_i32 = arith.constant 0 : i32
    %c0_i32_0 = arith.constant 0 : i32
    return %c0_i32, %arg0 : i32, i32
  }
}

</mosaic_0001>

<llo_original>
// kernel: strokenet_forward.1
$region0: #{strokenet_forward.1}
  #allocation0 [shape = 'u32[]', space=smem, size = 0x4, offset = 0x4, fixed_abs, tag = 'smem constant byte address 0x4 - core index']
  #allocation1 [shape = 'u32[144,128]{1,0:T(1,128)}', space=vmem, size = 0x12000, scoped, tag = 'internal scratch']
  %s0 = inlined_call_operand.vmem [shape: bf16[8,512], index: 0, kind: input, shape index: {}]
  %s1 = inlined_call_operand.vmem [shape: s32[2,512], index: 1, kind: input, shape index: {}]
  %s2 = inlined_call_operand.vmem [shape: bf16[64,8], index: 2, kind: input, shape index: {}]
  %s3 = inlined_call_operand.vmem [shape: bf16[64,9], index: 3, kind: input, shape index: {}]
  %s4 = inlined_call_operand.vmem [shape: bf16[40,64], index: 4, kind: input, shape index: {}]
  %s5 = inlined_call_operand.vmem [shape: bf16[14,40], index: 5, kind: input, shape index: {}]
  %s6 = inlined_call_operand.vmem [shape: f32[64,4], index: 6, kind: input, shape index: {}]
  %s7 = inlined_call_operand.vmem [shape: f32[1,512], index: 7, kind: output, shape index: {}]
  %s8 = sld [smem:[#allocation0]]
  $region61: #{strokenet_forward.1} parent=0
    _
  %s10 = ssub.s32 1, %s8
  %s11 = scalar_select 0, %s10, %s8
  loop: start=0, step=1, limit=4
  $region2: #{strokenet_forward.1} parent=0 // loop_pre_header
    _
  $region3: #{strokenet_forward.1} parent=0 // loop_header
    %s13 = sphi 0, %s17
    %p14 = scmp.ge.s32.totalorder %s13, 4
    %s23 = sphi 0, %s25
    %s26 = sphi 0, %s23
    %s27 = sphi 0, %s26
    %s43 = sphi 0, %s27
    %s49 = sphi 0, %s51
    %s52 = sphi 0, %s49
    %s53 = sphi 0, %s52
    %s69 = sphi 0, %s53
    %s73 = sphi 0, %s73
    %s75 = sphi 0, %s73
    %s76 = sphi 0, %s75
    %s90 = sphi 0, %s76
    %s94 = sphi 0, %s94
    %s96 = sphi 0, %s94
    %s97 = sphi 0, %s96
    %s111 = sphi 0, %s97
    %s115 = sphi 0, %s115
    %s117 = sphi 0, %s115
    %s118 = sphi 0, %s117
    %s132 = sphi 0, %s118
    %s136 = sphi 0, %s136
    %s138 = sphi 0, %s136
    %s139 = sphi 0, %s138
    %s153 = sphi 0, %s139
    %s157 = sphi 0, %s157
    %s159 = sphi 0, %s157
    %s160 = sphi 0, %s159
    %s174 = sphi 0, %s160
    %s180 = sphi 0, %s182
    %s183 = sphi 0, %s180
    %s184 = sphi 0, %s183
    %s200 = sphi 0, %s184
  $region4: #{strokenet_forward.1} parent=0 // loop_header_branch
    %16 = sbr.rel (%p14) target = $region8
  $region5: #{strokenet_forward.1} parent=0 // loop_body
    %s18 = ssub.s32 %s13, 1
    %s19 = ssub.s32 %s13, 2
    %s20 = sadd.s32 %s13, 1
    %s21 = ssub.s32 %s13, %s20
    %p22 = scmp.eq.s32.totalorder %s21, 0
    %s24 = sadd.s32 %s23, 1
    %s25 = scalar_select %p22, %s23, %s24
    %p28 = pneg %p22
    %p29 = scmp.eq.s32.totalorder %s13, 1
    %p30 = por %p28, %p29
    %p31 = scmp.ne.s32.totalorder %s23, %s26
    %p32 = scmp.eq.s32.totalorder %s13, 0
    %p33 = por %p31, %p32
    %p34 = scmp.ne.s32.totalorder %s23, %s26
    %p35 = scmp.eq.s32.totalorder %s18, 1
    %p36 = por %p34, %p35
    %p37 = scmp.ne.s32.totalorder %s26, %s27
    %p38 = scmp.eq.s32.totalorder %s18, 0
    %p39 = por %p37, %p38
    %p40 = scmp.ne.s32.totalorder %s26, %s27
    %p41 = scmp.eq.s32.totalorder %s19, 1
    %p42 = por %p40, %p41
    %p44 = scmp.ne.s32.totalorder %s27, %s43
    %p45 = scmp.eq.s32.totalorder %s19, 0
    %p46 = por %p44, %p45
    %s47 = ssub.s32 %s13, %s20
    %p48 = scmp.eq.s32.totalorder %s47, 0
    %s50 = sadd.s32 %s49, 1
    %s51 = scalar_select %p48, %s49, %s50
    %p54 = pneg %p48
    %p55 = scmp.eq.s32.totalorder %s13, 1
    %p56 = por %p54, %p55
    %p57 = scmp.ne.s32.totalorder %s49, %s52
    %p58 = scmp.eq.s32.totalorder %s13, 0
    %p59 = por %p57, %p58
    %p60 = scmp.ne.s32.totalorder %s49, %s52
    %p61 = scmp.eq.s32.totalorder %s18, 1
    %p62 = por %p60, %p61
    %p63 = scmp.ne.s32.totalorder %s52, %s53
    %p64 = scmp.eq.s32.totalorder %s18, 0
    %p65 = por %p63, %p64
    %p66 = scmp.ne.s32.totalorder %s52, %s53
    %p67 = scmp.eq.s32.totalorder %s19, 1
    %p68 = por %p66, %p67
    %p70 = scmp.ne.s32.totalorder %s53, %s69
    %p71 = scmp.eq.s32.totalorder %s19, 0
    %p72 = por %p70, %p71
    %s74 = sadd.s32 %s73, 1
    %p77 = scmp.eq.s32.totalorder %s13, 1
    %p78 = scmp.ne.s32.totalorder %s73, %s75
    %p79 = scmp.eq.s32.totalorder %s13, 0
    %p80 = por %p78, %p79
    %p81 = scmp.ne.s32.totalorder %s73, %s75
    %p82 = scmp.eq.s32.totalorder %s18, 1
    %p83 = por %p81, %p82
    %p84 = scmp.ne.s32.totalorder %s75, %s76
    %p85 = scmp.eq.s32.totalorder %s18, 0
    %p86 = por %p84, %p85
    %p87 = scmp.ne.s32.totalorder %s75, %s76
    %p88 = scmp.eq.s32.totalorder %s19, 1
    %p89 = por %p87, %p88
    %p91 = scmp.ne.s32.totalorder %s76, %s90
    %p92 = scmp.eq.s32.totalorder %s19, 0
    %p93 = por %p91, %p92
    %s95 = sadd.s32 %s94, 1
    %p98 = scmp.eq.s32.totalorder %s13, 1
    %p99 = scmp.ne.s32.totalorder %s94, %s96
    %p100 = scmp.eq.s32.totalorder %s13, 0
    %p101 = por %p99, %p100
    %p102 = scmp.ne.s32.totalorder %s94, %s96
    %p103 = scmp.eq.s32.totalorder %s18, 1
    %p104 = por %p102, %p103
    %p105 = scmp.ne.s32.totalorder %s96, %s97
    %p106 = scmp.eq.s32.totalorder %s18, 0
    %p107 = por %p105, %p106
    %p108 = scmp.ne.s32.totalorder %s96, %s97
    %p109 = scmp.eq.s32.totalorder %s19, 1
    %p110 = por %p108, %p109
    %p112 = scmp.ne.s32.totalorder %s97, %s111
    %p113 = scmp.eq.s32.totalorder %s19, 0
    %p114 = por %p112, %p113
    %s116 = sadd.s32 %s115, 1
    %p119 = scmp.eq.s32.totalorder %s13, 1
    %p120 = scmp.ne.s32.totalorder %s115, %s117
    %p121 = scmp.eq.s32.totalorder %s13, 0
    %p122 = por %p120, %p121
    %p123 = scmp.ne.s32.totalorder %s115, %s117
    %p124 = scmp.eq.s32.totalorder %s18, 1
    %p125 = por %p123, %p124
    %p126 = scmp.ne.s32.totalorder %s117, %s118
    %p127 = scmp.eq.s32.totalorder %s18, 0
    %p128 = por %p126, %p127
    %p129 = scmp.ne.s32.totalorder %s117, %s118
    %p130 = scmp.eq.s32.totalorder %s19, 1
    %p131 = por %p129, %p130
    %p133 = scmp.ne.s32.totalorder %s118, %s132
    %p134 = scmp.eq.s32.totalorder %s19, 0
    %p135 = por %p133, %p134
    %s137 = sadd.s32 %s136, 1
    %p140 = scmp.eq.s32.totalorder %s13, 1
    %p141 = scmp.ne.s32.totalorder %s136, %s138
    %p142 = scmp.eq.s32.totalorder %s13, 0
    %p143 = por %p141, %p142
    %p144 = scmp.ne.s32.totalorder %s136, %s138
    %p145 = scmp.eq.s32.totalorder %s18, 1
    %p146 = por %p144, %p145
    %p147 = scmp.ne.s32.totalorder %s138, %s139
    %p148 = scmp.eq.s32.totalorder %s18, 0
    %p149 = por %p147, %p148
    %p150 = scmp.ne.s32.totalorder %s138, %s139
    %p151 = scmp.eq.s32.totalorder %s19, 1
    %p152 = por %p150, %p151
    %p154 = scmp.ne.s32.totalorder %s139, %s153
    %p155 = scmp.eq.s32.totalorder %s19, 0
    %p156 = por %p154, %p155
    %s158 = sadd.s32 %s157, 1
    %p161 = scmp.eq.s32.totalorder %s13, 1
    %p162 = scmp.ne.s32.totalorder %s157, %s159
    %p163 = scmp.eq.s32.totalorder %s13, 0
    %p164 = por %p162, %p163
    %p165 = scmp.ne.s32.totalorder %s157, %s159
    %p166 = scmp.eq.s32.totalorder %s18, 1
    %p167 = por %p165, %p166
    %p168 = scmp.ne.s32.totalorder %s159, %s160
    %p169 = scmp.eq.s32.totalorder %s18, 0
    %p170 = por %p168, %p169
    %p171 = scmp.ne.s32.totalorder %s159, %s160
    %p172 = scmp.eq.s32.totalorder %s19, 1
    %p173 = por %p171, %p172
    %p175 = scmp.ne.s32.totalorder %s160, %s174
    %p176 = scmp.eq.s32.totalorder %s19, 0
    %p177 = por %p175, %p176
    %s178 = ssub.s32 %s13, %s20
    %p179 = scmp.eq.s32.totalorder %s178, 0
    %s181 = sadd.s32 %s180, 1
    %s182 = scalar_select %p179, %s180, %s181
    %p185 = pneg %p179
    %p186 = scmp.eq.s32.totalorder %s13, 1
    %p187 = por %p185, %p186
    %p188 = scmp.ne.s32.totalorder %s180, %s183
    %p189 = scmp.eq.s32.totalorder %s13, 0
    %p190 = por %p188, %p189
    %p191 = scmp.ne.s32.totalorder %s180, %s183
    %p192 = scmp.eq.s32.totalorder %s18, 1
    %p193 = por %p191, %p192
    %p194 = scmp.ne.s32.totalorder %s183, %s184
    %p195 = scmp.eq.s32.totalorder %s18, 0
    %p196 = por %p194, %p195
    %p197 = scmp.ne.s32.totalorder %s183, %s184
    %p198 = scmp.eq.s32.totalorder %s19, 1
    %p199 = por %p197, %p198
    %p201 = scmp.ne.s32.totalorder %s184, %s200
    %p202 = scmp.eq.s32.totalorder %s19, 0
    %p203 = por %p201, %p202
    %p204 = scmp.le.s32.totalorder 1, %s13
    %p205 = scmp.lt.s32.totalorder %s13, 3
    %p206 = pnand %p204, %p205
    %p207 = pneg %p206
    // Predicated region
    $region9: #{strokenet_forward.1} parent=5 // pred_check
      _
    $region10: #{strokenet_forward.1} parent=5 // pred_check_branch
      %209 = sbr.rel (%p206) target = $region12
    $region11: #{strokenet_forward.1} parent=5 // pred_region
      %s210 = ssub.s32 %s13, 1
      // Predicated region
      $region13: #{strokenet_forward.1} parent=11 // pred_check
        %p211 = pneg %p86
      $region14: #{strokenet_forward.1} parent=11 // pred_check_branch
        %213 = sbr.rel (%p211) target = $region16
      $region15: #{strokenet_forward.1} parent=11 // pred_region
        _
      $region16: #{strokenet_forward.1} parent=11 // pred_fallthru
        _
      // Predicated region
      $region17: #{strokenet_forward.1} parent=11 // pred_check
        %p214 = pneg %p107
      $region18: #{strokenet_forward.1} parent=11 // pred_check_branch
        %216 = sbr.rel (%p214) target = $region20
      $region19: #{strokenet_forward.1} parent=11 // pred_region
        _
      $region20: #{strokenet_forward.1} parent=11 // pred_fallthru
        _
      // Predicated region
      $region21: #{strokenet_forward.1} parent=11 // pred_check
        %p217 = pneg %p128
      $region22: #{strokenet_forward.1} parent=11 // pred_check_branch
        %219 = sbr.rel (%p217) target = $region24
      $region23: #{strokenet_forward.1} parent=11 // pred_region
        _
      $region24: #{strokenet_forward.1} parent=11 // pred_fallthru
        _
      // Predicated region
      $region25: #{strokenet_forward.1} parent=11 // pred_check
        %p220 = pneg %p149
      $region26: #{strokenet_forward.1} parent=11 // pred_check_branch
        %222 = sbr.rel (%p220) target = $region28
      $region27: #{strokenet_forward.1} parent=11 // pred_region
        _
      $region28: #{strokenet_forward.1} parent=11 // pred_fallthru
        _
      // Predicated region
      $region29: #{strokenet_forward.1} parent=11 // pred_check
        %p223 = pneg %p170
      $region30: #{strokenet_forward.1} parent=11 // pred_check_branch
        %225 = sbr.rel (%p223) target = $region32
      $region31: #{strokenet_forward.1} parent=11 // pred_region
        _
      $region32: #{strokenet_forward.1} parent=11 // pred_fallthru
        _
    $region12: #{strokenet_forward.1} parent=5 // pred_fallthru
      _
    %p226 = scmp.lt.s32.totalorder %s13, 2
    // Predicated region
    $region33: #{strokenet_forward.1} parent=5 // pred_check
      %p227 = pneg %p226
    $region34: #{strokenet_forward.1} parent=5 // pred_check_branch
      %229 = sbr.rel (%p227) target = $region36
    $region35: #{strokenet_forward.1} parent=5 // pred_region
      // Predicated region
      $region37: #{strokenet_forward.1} parent=35 // pred_check
        %p230 = pneg %p33
      $region38: #{strokenet_forward.1} parent=35 // pred_check_branch
        %232 = sbr.rel (%p230) target = $region40
      $region39: #{strokenet_forward.1} parent=35 // pred_region
        %s233 = smul.u32 2, %s13
        %p234 = scmp.lt.s32.totalorder %s233, 3
        %s235 = scalar_select %p234, %s233, 3
        %s236 = smul.addr %s235, 4
        %s237 = scalar_lea.vmem %s0, %s236
        %s238 = smul.u32 2, %s13
      $region40: #{strokenet_forward.1} parent=35 // pred_fallthru
        _
      // Predicated region
      $region41: #{strokenet_forward.1} parent=35 // pred_check
        %p239 = pneg %p59
      $region42: #{strokenet_forward.1} parent=35 // pred_check_branch
        %241 = sbr.rel (%p239) target = $region44
      $region43: #{strokenet_forward.1} parent=35 // pred_region
        %s242 = smul.u32 2, %s13
        %p243 = scmp.lt.s32.totalorder %s242, 3
        %s244 = scalar_select %p243, %s242, 3
        %s245 = smul.addr %s244, 2
        %s246 = scalar_lea.vmem %s1, %s245
        %s247 = smul.u32 2, %s13
      $region44: #{strokenet_forward.1} parent=35 // pred_fallthru
        _
    $region36: #{strokenet_forward.1} parent=5 // pred_fallthru
      _
    %p248 = scmp.le.s32.totalorder 1, %s13
    %p249 = scmp.lt.s32.totalorder %s13, 3
    %p250 = pnand %p248, %p249
    %p251 = pneg %p250
    // Predicated region
    $region45: #{strokenet_forward.1} parent=5 // pred_check
      _
    $region46: #{strokenet_forward.1} parent=5 // pred_check_branch
      %253 = sbr.rel (%p250) target = $region48
    $region47: #{strokenet_forward.1} parent=5 // pred_region
      %s254 = ssub.s32 %s13, 1
      %s255 = smul.u32 2, %s18
      %p256 = scmp.lt.s32.totalorder %s255, 3
      %s257 = scalar_select %p256, %s255, 3
      %s258 = smul.addr %s257, 4
      %s259 = scalar_lea.vmem %s0, %s258
      %p260 = pneg %p39
      %p261 = pneg %p36
      %s262 = smul.u32 2, %s18
      %p263 = scmp.lt.s32.totalorder %s262, 3
      %s264 = scalar_select %p263, %s262, 3
      %s265 = smul.addr %s264, 2
      %s266 = scalar_lea.vmem %s1, %s265
      %p267 = pneg %p65
      %p268 = pneg %p62
      %p269 = pneg %p86
      %p270 = pneg %p83
      %p271 = pneg %p107
      %p272 = pneg %p104
      %p273 = pneg %p128
      %p274 = pneg %p125
      %p275 = pneg %p149
      %p276 = pneg %p146
      %p277 = pneg %p170
      %p278 = pneg %p167
      %p279 = pneg %p196
      %p280 = pneg %p193
      %s281 = smul.u32 2, %s18
      %p282 = scmp.lt.s32.totalorder %s281, 3
      %s283 = scalar_select %p282, %s281, 3
      %s284 = scalar_lea.vmem %s7, %s283
      %s285 = smul.u32 2, %s18
      %p286 = scmp.lt.s32.totalorder %s285, 3
      %s287 = scalar_select %p286, %s285, 3
      %s288 = smul.addr %s287, 4
      %s289 = scalar_lea.vmem %s0, %s288
      %s290 = smul.u32 2, %s18
      %s291 = smul.u32 2, %s18
      %p292 = scmp.lt.s32.totalorder %s291, 3
      %s293 = scalar_select %p292, %s291, 3
      %s294 = smul.addr %s293, 2
      %s295 = scalar_lea.vmem %s1, %s294
      %s296 = smul.u32 2, %s18
      %s297 = smul.u32 2, %s18
      %p298 = scmp.lt.s32.totalorder %s297, 3
      %s299 = scalar_select %p298, %s297, 3
      %s300 = scalar_lea.vmem %s7, %s299
      %s301 = smul.u32 2, %s18
      %v303 = vld [vmem:[%s2] sm:$0xf]
      %v304 = vld [vmem:[%s2 + $0x4] sm:$0xf]
      %v305 = vld [vmem:[%s2 + $0x8] sm:$0xf]
      %v306 = vld [vmem:[%s2 + $0xc] sm:$0xf]
      %v307 = vld [vmem:[%s2 + $0x10] sm:$0xf]
      %v308 = vld [vmem:[%s2 + $0x14] sm:$0xf]
      %v309 = vld [vmem:[%s2 + $0x18] sm:$0xf]
      %v310 = vld [vmem:[%s2 + $0x1c] sm:$0xf]
      %v311 = vld [vmem:[%s289] sm:$0xff]
      %v312 = vld [vmem:[%s295] sm:$0xf]
      %v313 = vlaneseq
      %v314 = vshrl.u32 %v313, 7
      %v315 = vadd.s32 %v314, 8
      %v316 = vlaneseq
      %v317 = vshrl.u32 %v316, 7
      %v318 = vsub.s32 0, %v317
      %v319 = vrot.slane %v312, %v318
      %v320 = vlaneseq
      %v321 = vshrl.u32 %v320, 7
      %v322 = vsub.s32 2, %v321
      %v323 = vrot.slane %v312, %v322
      %v324 = vlaneseq
      %v325 = vshrl.u32 %v324, 7
      %v326 = vsub.s32 0, %v325
      %v327 = vrot.slane %v319, %v326
      %v328 = vlaneseq
      %v329 = vshrl.u32 %v328, 7
      %v330 = vsub.s32 0, %v329
      %v331 = vrot.slane %v323, %v330
      %vm332 = vcmp.eq.s32.totalorder %v314, %v327
      %vm333 = vcmp.eq.s32.totalorder %v314, %v331
      %vm334 = vcmp.eq.s32.totalorder %v315, %v327
      %vm335 = vcmp.eq.s32.totalorder %v315, %v331
      %v336 = vlaneseq
      %v337 = vshrl.u32 %v336, 7
      %v338 = vsub.s32 1, %v337
      %v339 = vrot.slane %v312, %v338
      %v340 = vlaneseq
      %v341 = vshrl.u32 %v340, 7
      %v342 = vsub.s32 3, %v341
      %v343 = vrot.slane %v312, %v342
      %v344 = vlaneseq
      %v345 = vshrl.u32 %v344, 7
      %v346 = vsub.s32 1, %v345
      %v347 = vrot.slane %v339, %v346
      %v348 = vlaneseq
      %v349 = vshrl.u32 %v348, 7
      %v350 = vsub.s32 1, %v349
      %v351 = vrot.slane %v343, %v350
      %vm352 = vcmp.eq.s32.totalorder %v314, %v347
      %vm353 = vcmp.eq.s32.totalorder %v314, %v351
      %vm354 = vcmp.eq.s32.totalorder %v315, %v347
      %vm355 = vcmp.eq.s32.totalorder %v315, %v351
      %vm356 = vmor %vm332, %vm352
      %vm357 = vmor %vm333, %vm353
      %vm358 = vmor %vm334, %vm354
      %vm359 = vmor %vm335, %vm355
      %v360 = vld [vmem:[%s3] sm:$0xf]
      %v361 = vld [vmem:[%s3 + $0x4] sm:$0xf]
      %v362 = vld [vmem:[%s3 + $0x8] sm:$0xf]
      %v363 = vld [vmem:[%s3 + $0xc] sm:$0xf]
      %v364 = vld [vmem:[%s3 + $0x10] sm:$0xf]
      %v365 = vld [vmem:[%s3 + $0x14] sm:$0xf]
      %v366 = vld [vmem:[%s3 + $0x18] sm:$0xf]
      %v367 = vld [vmem:[%s3 + $0x1c] sm:$0xf]
      %v368 = vsel %vm356, 1, 0
      %v369 = vsel %vm357, 1, 0
      %v370 = vsel %vm358, 1, 0
      %v371 = vsel %vm359, 1, 0
      %v372 = vcvt.s32.f32 %v368
      %v373 = vcvt.s32.f32 %v369
      %v374 = vcvt.s32.f32 %v370
      %v375 = vcvt.s32.f32 %v371
      %v376 = vpack.c.bf16 %v374, %v372
      %v377 = vpack.c.bf16 %v375, %v373
      %v386 = vunpack.c.l.b16 %v360
      %v387 = vunpack.c.l.b16 %v361
      %v388 = vunpack.c.l.b16 %v362
      %v389 = vunpack.c.l.b16 %v363
      %v390 = vunpack.c.l.b16 %v364
      %v391 = vunpack.c.l.b16 %v365
      %v392 = vunpack.c.l.b16 %v366
      %v393 = vunpack.c.l.b16 %v367
      %v394 = vpack.c.b16 %v387, %v386
      %v395 = vpack.c.b16 %v389, %v388
      %v396 = vpack.c.b16 %v391, %v390
      %v397 = vpack.c.b16 %v393, %v392
      %vm398 = vcmask 72704
      %v400 = vsel %vm398, %v394, 0
      %v403 = vsel %vm398, %v395, 0
      %v406 = vsel %vm398, %v396, 0
      %v409 = vsel %vm398, %v397, 0
      %vm411 = vcmask 1043456
      %vm412 = vcmask 1044480
      %v413 = vsel %vm411, 4294967295, 65535
      %v414 = vsel %vm412, %v413, 0
      %v416 = vand.u32 %v376, %v414
      %v419 = vand.u32 %v377, %v414
      %421 = vmatprep.subr.bf16.mxu0 0
      %422 = vmatpush1.bf16.msra.mxu0 0
      %423 = vmatprep.subr.bf16.mxu0 0
      %424 = vmatpush1.bf16.msra.mxu0 0
      %425 = vmatprep.subr.bf16.mxu0 0
      %426 = vmatpush1.bf16.msra.mxu0 0
      %427 = vmatprep.subr.bf16.mxu0 0
      %428 = vmatpush1.bf16.msra.mxu0 0
      %429 = vmatprep.subr.bf16.mxu0 0
      %430 = vmatpush1.bf16.msra.mxu0 0
      %431 = vmatprep.subr.bf16.mxu0 0
      %432 = vmatpush1.bf16.msra.mxu0 0
      %433 = vmatprep.subr.bf16.mxu0 0
      %434 = vmatpush1.bf16.msra.mxu0 0
      %435 = vmatprep.subr.bf16.mxu0 %v419
      %436 = vmatpush1.bf16.msra.mxu0 %v416
      %437 = vmatprep.subr.bf16.mxu0 0
      %438 = vmatpush2.bf16.msra.mxu0 0
      %439 = vmatprep.subr.bf16.mxu0 0
      %440 = vmatpush2.bf16.msra.mxu0 0
      %441 = vmatprep.subr.bf16.mxu0 0
      %442 = vmatpush2.bf16.msra.mxu0 0
      %443 = vmatprep.subr.bf16.mxu0 0
      %444 = vmatpush2.bf16.msra.mxu0 0
      %445 = vmatprep.subr.bf16.mxu0 0
      %446 = vmatpush2.bf16.msra.mxu0 0
      %447 = vmatprep.subr.bf16.mxu0 0
      %448 = vmatpush2.bf16.msra.mxu0 0
      %449 = vmatprep.subr.bf16.mxu0 0
      %450 = vmatpush2.bf16.msra.mxu0 0
      %451 = vmatprep.subr.bf16.mxu0 0
      %452 = vmatpush2.bf16.msra.mxu0 0
      %453 = vmatprep.mubr.bf16.mxu0 0
      %454 = vmatmul.mubr.bf16.gmra.mxu0 %v400
      %v455 = vpop.f32.mrf.mxu0
      %v456 = vadd.f32 0.0, %v455
      %v457 = vpop.f32.mrf.mxu0
      %v458 = vadd.f32 0.0, %v457
      %v459 = vpop.f32.mrf.mxu0
      %v460 = vadd.f32 0.0, %v459
      %v461 = vpop.f32.mrf.mxu0
      %v462 = vadd.f32 0.0, %v461
      %463 = vmatprep.mubr.bf16.mxu0 0
      %464 = vmatmul.mubr.bf16.gmra.mxu0 %v403
      %v465 = vpop.f32.mrf.mxu0
      %v466 = vadd.f32 0.0, %v465
      %v467 = vpop.f32.mrf.mxu0
      %v468 = vadd.f32 0.0, %v467
      %v469 = vpop.f32.mrf.mxu0
      %v470 = vadd.f32 0.0, %v469
      %v471 = vpop.f32.mrf.mxu0
      %v472 = vadd.f32 0.0, %v471
      %473 = vmatprep.mubr.bf16.mxu0 0
      %474 = vmatmul.mubr.bf16.gmra.mxu0 %v406
      %v475 = vpop.f32.mrf.mxu0
      %v476 = vadd.f32 0.0, %v475
      %v477 = vpop.f32.mrf.mxu0
      %v478 = vadd.f32 0.0, %v477
      %v479 = vpop.f32.mrf.mxu0
      %v480 = vadd.f32 0.0, %v479
      %v481 = vpop.f32.mrf.mxu0
      %v482 = vadd.f32 0.0, %v481
      %483 = vmatprep.mubr.bf16.mxu0 0
      %484 = vmatmul.mubr.bf16.gmra.mxu0 %v409
      %v485 = vpop.f32.mrf.mxu0
      %v486 = vadd.f32 0.0, %v485
      %v487 = vpop.f32.mrf.mxu0
      %v488 = vadd.f32 0.0, %v487
      %v489 = vpop.f32.mrf.mxu0
      %v490 = vadd.f32 0.0, %v489
      %v491 = vpop.f32.mrf.mxu0
      %v492 = vadd.f32 0.0, %v491
      %493 = vdwg.mxu0
      %v502 = vunpack.c.l.b16 %v303
      %v503 = vunpack.c.l.b16 %v304
      %v504 = vunpack.c.l.b16 %v305
      %v505 = vunpack.c.l.b16 %v306
      %v506 = vunpack.c.l.b16 %v307
      %v507 = vunpack.c.l.b16 %v308
      %v508 = vunpack.c.l.b16 %v309
      %v509 = vunpack.c.l.b16 %v310
      %v510 = vpack.c.b16 %v503, %v502
      %v511 = vpack.c.b16 %v505, %v504
      %v512 = vpack.c.b16 %v507, %v506
      %v513 = vpack.c.b16 %v509, %v508
      %v515 = vunpack.c.l.b16 %v311
      %v516 = vunpack.c.h.b16 %v311
      %v517 = vpack.c.b16 %v515, %v515
      %v518 = vpack.c.b16 %v516, %v516
      %vm519 = vcmask 64512
      %v521 = vsel %vm519, %v510, 0
      %v524 = vsel %vm519, %v511, 0
      %v527 = vsel %vm519, %v512, 0
      %v530 = vsel %vm519, %v513, 0
      %v533 = vsel %vm411, %v517, 0
      %v536 = vsel %vm411, %v518, 0
      %538 = vmatprep.subr.bf16.mxu0 0
      %539 = vmatpush1.bf16.msra.mxu0 0
      %540 = vmatprep.subr.bf16.mxu0 0
      %541 = vmatpush1.bf16.msra.mxu0 0
      %542 = vmatprep.subr.bf16.mxu0 0
      %543 = vmatpush1.bf16.msra.mxu0 0
      %544 = vmatprep.subr.bf16.mxu0 0
      %545 = vmatpush1.bf16.msra.mxu0 0
      %546 = vmatprep.subr.bf16.mxu0 0
      %547 = vmatpush1.bf16.msra.mxu0 0
      %548 = vmatprep.subr.bf16.mxu0 0
      %549 = vmatpush1.bf16.msra.mxu0 0
      %550 = vmatprep.subr.bf16.mxu0 0
      %551 = vmatpush1.bf16.msra.mxu0 0
      %552 = vmatprep.subr.bf16.mxu0 %v536
      %553 = vmatpush1.bf16.msra.mxu0 %v533
      %554 = vmatprep.subr.bf16.mxu0 0
      %555 = vmatpush2.bf16.msra.mxu0 0
      %556 = vmatprep.subr.bf16.mxu0 0
      %557 = vmatpush2.bf16.msra.mxu0 0
      %558 = vmatprep.subr.bf16.mxu0 0
      %559 = vmatpush2.bf16.msra.mxu0 0
      %560 = vmatprep.subr.bf16.mxu0 0
      %561 = vmatpush2.bf16.msra.mxu0 0
      %562 = vmatprep.subr.bf16.mxu0 0
      %563 = vmatpush2.bf16.msra.mxu0 0
      %564 = vmatprep.subr.bf16.mxu0 0
      %565 = vmatpush2.bf16.msra.mxu0 0
      %566 = vmatprep.subr.bf16.mxu0 0
      %567 = vmatpush2.bf16.msra.mxu0 0
      %568 = vmatprep.subr.bf16.mxu0 0
      %569 = vmatpush2.bf16.msra.mxu0 0
      %570 = vmatprep.mubr.bf16.mxu0 0
      %571 = vmatmul.mubr.bf16.gmra.mxu0 %v521
      %v572 = vpop.f32.mrf.mxu0
      %v573 = vadd.f32 %v456, %v572
      %v574 = vpop.f32.mrf.mxu0
      %v575 = vadd.f32 %v458, %v574
      %v576 = vpop.f32.mrf.mxu0
      %v577 = vadd.f32 %v460, %v576
      %v578 = vpop.f32.mrf.mxu0
      %v579 = vadd.f32 %v462, %v578
      %580 = vmatprep.mubr.bf16.mxu0 0
      %581 = vmatmul.mubr.bf16.gmra.mxu0 %v524
      %v582 = vpop.f32.mrf.mxu0
      %v583 = vadd.f32 %v466, %v582
      %v584 = vpop.f32.mrf.mxu0
      %v585 = vadd.f32 %v468, %v584
      %v586 = vpop.f32.mrf.mxu0
      %v587 = vadd.f32 %v470, %v586
      %v588 = vpop.f32.mrf.mxu0
      %v589 = vadd.f32 %v472, %v588
      %590 = vmatprep.mubr.bf16.mxu0 0
      %591 = vmatmul.mubr.bf16.gmra.mxu0 %v527
      %v592 = vpop.f32.mrf.mxu0
      %v593 = vadd.f32 %v476, %v592
      %v594 = vpop.f32.mrf.mxu0
      %v595 = vadd.f32 %v478, %v594
      %v596 = vpop.f32.mrf.mxu0
      %v597 = vadd.f32 %v480, %v596
      %v598 = vpop.f32.mrf.mxu0
      %v599 = vadd.f32 %v482, %v598
      %600 = vmatprep.mubr.bf16.mxu0 0
      %601 = vmatmul.mubr.bf16.gmra.mxu0 %v530
      %v602 = vpop.f32.mrf.mxu0
      %v603 = vadd.f32 %v486, %v602
      %v604 = vpop.f32.mrf.mxu0
      %v605 = vadd.f32 %v488, %v604
      %v606 = vpop.f32.mrf.mxu0
      %v607 = vadd.f32 %v490, %v606
      %v608 = vpop.f32.mrf.mxu0
      %v609 = vadd.f32 %v492, %v608
      %610 = vdwg.mxu0
      %v611 = vmax.f32 %v573, 0.0
      %v612 = vmax.f32 %v575, 0.0
      %v613 = vmax.f32 %v577, 0.0
      %v614 = vmax.f32 %v579, 0.0
      %v615 = vmax.f32 %v583, 0.0
      %v616 = vmax.f32 %v585, 0.0
      %v617 = vmax.f32 %v587, 0.0
      %v618 = vmax.f32 %v589, 0.0
      %v619 = vmax.f32 %v593, 0.0
      %v620 = vmax.f32 %v595, 0.0
      %v621 = vmax.f32 %v597, 0.0
      %v622 = vmax.f32 %v599, 0.0
      %v623 = vmax.f32 %v603, 0.0
      %v624 = vmax.f32 %v605, 0.0
      %v625 = vmax.f32 %v607, 0.0
      %v626 = vmax.f32 %v609, 0.0
      %v627 = vpack.c.bf16 %v613, %v611
      %v628 = vpack.c.bf16 %v614, %v612
      %v629 = vpack.c.bf16 %v617, %v615
      %v630 = vpack.c.bf16 %v618, %v616
      %v631 = vpack.c.bf16 %v621, %v619
      %v632 = vpack.c.bf16 %v622, %v620
      %v633 = vpack.c.bf16 %v625, %v623
      %v634 = vpack.c.bf16 %v626, %v624
      %v635 = vld [vmem:[%s6] sm:$0xff]
      %v636 = vld [vmem:[%s6 + $0x8] sm:$0xff]
      %v637 = vld [vmem:[%s6 + $0x10] sm:$0xff]
      %v638 = vld [vmem:[%s6 + $0x18] sm:$0xff]
      %v639 = vld [vmem:[%s6 + $0x20] sm:$0xff]
      %v640 = vld [vmem:[%s4] sm:$0xf]
      %v641 = vld [vmem:[%s4 + $0x4] sm:$0xf]
      %v642 = vld [vmem:[%s4 + $0x8] sm:$0xf]
      %v643 = vld [vmem:[%s4 + $0xc] sm:$0xf]
      %v644 = vld [vmem:[%s4 + $0x10] sm:$0xf]
      %646 = vset.pattern.permute.xlu0 0
      %647 = vperm.xlu0 %646, %v635
      %v648 = vpop.permute.xlu0 %647
      %651 = vset.pattern.permute.xlu0 0
      %652 = vperm.xlu0 %651, %v636
      %v653 = vpop.permute.xlu0 %652
      %656 = vset.pattern.permute.xlu0 0
      %657 = vperm.xlu0 %656, %v637
      %v658 = vpop.permute.xlu0 %657
      %661 = vset.pattern.permute.xlu0 0
      %662 = vperm.xlu0 %661, %v638
      %v663 = vpop.permute.xlu0 %662
      %666 = vset.pattern.permute.xlu0 0
      %667 = vperm.xlu0 %666, %v639
      %v668 = vpop.permute.xlu0 %667
      %v675 = vunpack.c.l.b16 %v640
      %v676 = vunpack.c.l.b16 %v641
      %v677 = vunpack.c.l.b16 %v642
      %v678 = vunpack.c.l.b16 %v643
      %v679 = vunpack.c.l.b16 %v644
      %v680 = vpack.c.b16 %v676, %v675
      %v681 = vpack.c.b16 %v678, %v677
      %v682 = vpack.c.b16 %v679, %v679
      %vm683 = vcmask 523264
      %v685 = vsel %vm683, %v680, 0
      %v688 = vsel %vm683, %v681, 0
      %v691 = vsel %vm683, %v682, 0
      %693 = vmatprep.subr.bf16.mxu0 0
      %694 = vmatpush1.bf16.msra.mxu0 0
      %695 = vmatprep.subr.bf16.mxu0 0
      %696 = vmatpush1.bf16.msra.mxu0 0
      %697 = vmatprep.subr.bf16.mxu0 0
      %698 = vmatpush1.bf16.msra.mxu0 0
      %699 = vmatprep.subr.bf16.mxu0 0
      %700 = vmatpush1.bf16.msra.mxu0 0
      %701 = vmatprep.subr.bf16.mxu0 %v634
      %702 = vmatpush1.bf16.msra.mxu0 %v633
      %703 = vmatprep.subr.bf16.mxu0 %v632
      %704 = vmatpush1.bf16.msra.mxu0 %v631
      %705 = vmatprep.subr.bf16.mxu0 %v630
      %706 = vmatpush1.bf16.msra.mxu0 %v629
      %707 = vmatprep.subr.bf16.mxu0 %v628
      %708 = vmatpush1.bf16.msra.mxu0 %v627
      %709 = vmatprep.subr.bf16.mxu0 0
      %710 = vmatpush2.bf16.msra.mxu0 0
      %711 = vmatprep.subr.bf16.mxu0 0
      %712 = vmatpush2.bf16.msra.mxu0 0
      %713 = vmatprep.subr.bf16.mxu0 0
      %714 = vmatpush2.bf16.msra.mxu0 0
      %715 = vmatprep.subr.bf16.mxu0 0
      %716 = vmatpush2.bf16.msra.mxu0 0
      %717 = vmatprep.subr.bf16.mxu0 0
      %718 = vmatpush2.bf16.msra.mxu0 0
      %719 = vmatprep.subr.bf16.mxu0 0
      %720 = vmatpush2.bf16.msra.mxu0 0
      %721 = vmatprep.subr.bf16.mxu0 0
      %722 = vmatpush2.bf16.msra.mxu0 0
      %723 = vmatprep.subr.bf16.mxu0 0
      %724 = vmatpush2.bf16.msra.mxu0 0
      %725 = vmatprep.mubr.bf16.mxu0 0
      %726 = vmatmul.mubr.bf16.gmra.mxu0 %v685
      %v727 = vpop.f32.mrf.mxu0
      %v728 = vadd.f32 %v648, %v727
      %v729 = vpop.f32.mrf.mxu0
      %v730 = vadd.f32 %v648, %v729
      %v731 = vpop.f32.mrf.mxu0
      %v732 = vadd.f32 %v653, %v731
      %v733 = vpop.f32.mrf.mxu0
      %v734 = vadd.f32 %v653, %v733
      %735 = vmatprep.mubr.bf16.mxu0 0
      %736 = vmatmul.mubr.bf16.gmra.mxu0 %v688
      %v737 = vpop.f32.mrf.mxu0
      %v738 = vadd.f32 %v658, %v737
      %v739 = vpop.f32.mrf.mxu0
      %v740 = vadd.f32 %v658, %v739
      %v741 = vpop.f32.mrf.mxu0
      %v742 = vadd.f32 %v663, %v741
      %v743 = vpop.f32.mrf.mxu0
      %v744 = vadd.f32 %v663, %v743
      %745 = vmatprep.mubr.bf16.mxu0 0
      %746 = vmatmul.mubr.bf16.gmra.mxu0 %v691
      %v747 = vpop.f32.mrf.mxu0
      %v748 = vadd.f32 %v668, %v747
      %v749 = vpop.f32.mrf.mxu0
      %v750 = vadd.f32 %v668, %v749
      %v751 = vpop.f32.mrf.mxu0
      %v752 = vpop.f32.mrf.mxu0
      %753 = vdwg.mxu0
      %v754 = vmax.f32 %v728, 0.0
      %v755 = vmax.f32 %v730, 0.0
      %v756 = vmax.f32 %v732, 0.0
      %v757 = vmax.f32 %v734, 0.0
      %v758 = vmax.f32 %v738, 0.0
      %v759 = vmax.f32 %v740, 0.0
      %v760 = vmax.f32 %v742, 0.0
      %v761 = vmax.f32 %v744, 0.0
      %v762 = vmax.f32 %v748, 0.0
      %v763 = vmax.f32 %v750, 0.0
      %v764 = vpack.c.bf16 %v756, %v754
      %v765 = vpack.c.bf16 %v757, %v755
      %v766 = vpack.c.bf16 %v760, %v758
      %v767 = vpack.c.bf16 %v761, %v759
      %v768 = vpack.c.bf16 %v762, %v762
      %v769 = vpack.c.bf16 %v763, %v763
      %v770 = vld [vmem:[%s5] sm:$0xf]
      %v771 = vld [vmem:[%s5 + $0x4] sm:$0x7]
      %772 = vset.pattern.permute.xlu0 1
      %773 = vperm.xlu0 %772, %v635
      %v774 = vpop.permute.xlu0 %773
      %776 = vset.pattern.permute.xlu0 1
      %777 = vperm.xlu0 %776, %v636
      %v778 = vpop.permute.xlu0 %777
      %v782 = vunpack.c.l.b16 %v770
      %v783 = vunpack.c.l.b16 %v771
      %v784 = vpack.c.b16 %v783, %v782
      %vm785 = vcmask 326656
      %v787 = vsel %vm785, %v784, 0
      %v790 = vsel %vm411, %v768, 0
      %v793 = vsel %vm411, %v769, 0
      %795 = vmatprep.subr.bf16.mxu0 0
      %796 = vmatpush1.bf16.msra.mxu0 0
      %797 = vmatprep.subr.bf16.mxu0 0
      %798 = vmatpush1.bf16.msra.mxu0 0
      %799 = vmatprep.subr.bf16.mxu0 0
      %800 = vmatpush1.bf16.msra.mxu0 0
      %801 = vmatprep.subr.bf16.mxu0 0
      %802 = vmatpush1.bf16.msra.mxu0 0
      %803 = vmatprep.subr.bf16.mxu0 0
      %804 = vmatpush1.bf16.msra.mxu0 0
      %805 = vmatprep.subr.bf16.mxu0 %v793
      %806 = vmatpush1.bf16.msra.mxu0 %v790
      %807 = vmatprep.subr.bf16.mxu0 %v767
      %808 = vmatpush1.bf16.msra.mxu0 %v766
      %809 = vmatprep.subr.bf16.mxu0 %v765
      %810 = vmatpush1.bf16.msra.mxu0 %v764
      %811 = vmatprep.subr.bf16.mxu0 0
      %812 = vmatpush2.bf16.msra.mxu0 0
      %813 = vmatprep.subr.bf16.mxu0 0
      %814 = vmatpush2.bf16.msra.mxu0 0
      %815 = vmatprep.subr.bf16.mxu0 0
      %816 = vmatpush2.bf16.msra.mxu0 0
      %817 = vmatprep.subr.bf16.mxu0 0
      %818 = vmatpush2.bf16.msra.mxu0 0
      %819 = vmatprep.subr.bf16.mxu0 0
      %820 = vmatpush2.bf16.msra.mxu0 0
      %821 = vmatprep.subr.bf16.mxu0 0
      %822 = vmatpush2.bf16.msra.mxu0 0
      %823 = vmatprep.subr.bf16.mxu0 0
      %824 = vmatpush2.bf16.msra.mxu0 0
      %825 = vmatprep.subr.bf16.mxu0 0
      %826 = vmatpush2.bf16.msra.mxu0 0
      %827 = vmatprep.mubr.bf16.mxu0 0
      %828 = vmatmul.mubr.bf16.gmra.mxu0 %v787
      %v829 = vpop.f32.mrf.mxu0
      %v830 = vadd.f32 %v774, %v829
      %v831 = vpop.f32.mrf.mxu0
      %v832 = vadd.f32 %v774, %v831
      %v833 = vpop.f32.mrf.mxu0
      %v834 = vadd.f32 %v778, %v833
      %v835 = vpop.f32.mrf.mxu0
      %v836 = vadd.f32 %v778, %v835
      %837 = vdwg.mxu0
      %v838 = vmax.f32 %v830, 0.0
      %v839 = vmax.f32 %v832, 0.0
      %v840 = vmax.f32 %v834, 0.0
      %v841 = vmax.f32 %v836, 0.0
      %842 = vset.pattern.permute.xlu0 2
      %843 = vperm.xlu0 %842, %v635
      %v844 = vpop.permute.xlu0 %843
      %846 = vset.pattern.permute.xlu0 2
      %847 = vperm.xlu0 %846, %v636
      %v848 = vpop.permute.xlu0 %847
      %v850 = vmul.f32 %v838, %v844
      %v851 = vmul.f32 %v839, %v844
      %v852 = vmul.f32 %v840, %v848
      %v853 = vmul.f32 %v841, %v848
      %vm854 = vcmask 1045504
      %v855 = vsel %vm854, %v852, 0.0
      %v856 = vadd.f32 %v850, %v855
      %v857 = vrot.slane %v856, 4
      %v858 = vadd.f32 %v856, %v857
      %v859 = vrot.slane %v858, 2
      %v860 = vadd.f32 %v858, %v859
      %v861 = vrot.slane %v860, 1
      %v862 = vadd.f32 %v860, %v861
      %v863 = vsel %vm854, %v853, 0.0
      %v864 = vadd.f32 %v851, %v863
      %v865 = vrot.slane %v864, 4
      %v866 = vadd.f32 %v864, %v865
      %v867 = vrot.slane %v866, 2
      %v868 = vadd.f32 %v866, %v867
      %v869 = vrot.slane %v868, 1
      %v870 = vadd.f32 %v868, %v869
      %871 = vset.pattern.permute.xlu0 3
      %872 = vperm.xlu0 %871, %v635
      %v873 = vpop.permute.xlu0 %872
      %v875 = vadd.f32 %v862, %v873
      %v876 = vadd.f32 %v870, %v873
      %v877 = vmax.f32 %v875, -30.0
      %v878 = vmax.f32 %v876, -30.0
      %v879 = vmin.f32 %v877, 30.0
      %v880 = vmin.f32 %v878, 30.0
      %v881 = vsub.f32 0.0, %v879
      %v882 = vsub.f32 0.0, %v880
      %v883 = vmul.f32 %v881, 1.442695
      %v884 = vpow.pop %v883
      %v885 = vmul.f32 %v882, 1.442695
      %v886 = vpow.pop %v885
      %v887 = vadd.f32 %v884, 1.0
      %v888 = vadd.f32 %v886, 1.0
      %v889 = vrcp.pop %v887
      %v890 = vrcp.pop %v888
      %v893 = vcombine.low %v889, %v890
      %v895 = vunpack.c.l.s4 1966171168
      %v896 = vunpack.c.0.s8 %v895
      %v897 = vlaneseq
      %v898 = vshrl.u32 %v897, 7
      %v899 = vsub.s32 %v896, %v898
      %v900 = vrot.slane %v893, %v899
      %v902 = vunpack.c.l.s4 1966171168
      %v903 = vunpack.c.0.s8 %v902
      %v904 = vlaneseq
      %v905 = vshrl.u32 %v904, 7
      %v906 = vsub.s32 %v903, %v905
      %v907 = vrot.slane %v900, %v906
      %v909 = vlaneseq
      %vm910 = vcmp.ge.s32.totalorder %v909, 0
      %vm911 = vcmp.lt.s32.totalorder %v909, 256
      %vm912 = vmand %vm910, %vm911
      %913 = vst.msk [vmem:[%s300] sm:$0x3] %vm912, %v907
      %s914 = smul.u32 2, %s18
      %p915 = scmp.lt.s32.totalorder %s914, 3
      %s916 = scalar_select %p915, %s914, 3
      %s917 = scalar_lea.vmem %s7, %s916
      // Predicated region
      $region49: #{strokenet_forward.1} parent=47 // pred_check
        %p918 = pneg %p193
      $region50: #{strokenet_forward.1} parent=47 // pred_check_branch
        %920 = sbr.rel (%p918) target = $region52
      $region51: #{strokenet_forward.1} parent=47 // pred_region
        %s921 = smul.u32 2, %s18
      $region52: #{strokenet_forward.1} parent=47 // pred_fallthru
        _
    $region48: #{strokenet_forward.1} parent=5 // pred_fallthru
      _
    %p922 = scmp.le.s32.totalorder 2, %s13
    // Predicated region
    $region53: #{strokenet_forward.1} parent=5 // pred_check
      %p923 = pneg %p922
    $region54: #{strokenet_forward.1} parent=5 // pred_check_branch
      %925 = sbr.rel (%p923) target = $region56
    $region55: #{strokenet_forward.1} parent=5 // pred_region
      %s926 = ssub.s32 %s13, 2
      // Predicated region
      $region57: #{strokenet_forward.1} parent=55 // pred_check
        %p927 = pneg %p199
      $region58: #{strokenet_forward.1} parent=55 // pred_check_branch
        %929 = sbr.rel (%p927) target = $region60
      $region59: #{strokenet_forward.1} parent=55 // pred_region
        %s930 = smul.u32 2, %s19
        %p931 = scmp.lt.s32.totalorder %s930, 3
        %s932 = scalar_select %p931, %s930, 3
        %s933 = scalar_lea.vmem %s7, %s932
      $region60: #{strokenet_forward.1} parent=55 // pred_fallthru
        _
    $region56: #{strokenet_forward.1} parent=5 // pred_fallthru
      _
  $region6: #{strokenet_forward.1} parent=0 // loop_footer
    %s17 = sadd.s32 1, %s13
  $region7: #{strokenet_forward.1} parent=0 // loop_footer_branch
    %12 = sbr.rel target = $region3
  $region8: #{strokenet_forward.1} parent=0 // loop_exit
    _

</llo_original>
